<compile_context>
chip_gen: v7x
topology: tpu7x:2x2x1
jax: 0.10.0
libtpu: 0.0.40
codegen_flags: <defaults>
</compile_context>

<pallas_src>
import jax
import jax.numpy as jnp
from jax import lax
from jax.experimental import pallas as pl
from jax.experimental.pallas import tpu as pltpu


def _make_mixedop_kernel(n_ops, cout):
    def kernel(w_ref, p_ref, out_ref):
        # Single fused MXU matmul: (C3, P) @ (P, TM) -> (C3, TM), f32 accumulate.
        y = jnp.dot(w_ref[...], p_ref[...], preferred_element_type=jnp.float32)
        # function = relu; softmax alphas (>= 0) are pre-folded into W and b.
        y = jnp.maximum(y, 0.0)
        acc = y[0:cout]
        for g in range(1, n_ops):                 # weighted mixture == group sum
            acc = acc + y[g * cout:(g + 1) * cout]
        out_ref[...] = acc.astype(out_ref.dtype)  # lane-dense (Cout, TM) store
    return kernel


def _choose_tile(m, target_tm=1024):
    """Largest multiple-of-128 tile <= target_tm; if that collapses the grid
    to a single step and there is room, halve it so the 'parallel' axis has
    >= 2 steps (lets v7x shard across its two TensorCores)."""
    tm = max(128, (min(target_tm, m) // 128) * 128)
    if m // tm < 2 and m >= 256:
        tm = max(128, ((m // 2) // 128) * 128)
    return tm


def mixed_op_pallas(w_all_t, patches_t, n_ops, cout, *, target_tm=1024):
    """w_all_t:   (C3, P)  bf16  alpha-folded, bias-augmented, op-concat weights
       patches_t: (P, M)   bf16  shared bias-augmented im2col patches (M on lanes)
       returns    (cout, M) bf16 mixed output, M on the lane axis."""
    c3, P = w_all_t.shape
    _, M = patches_t.shape

    tm = _choose_tile(M, target_tm)
    grid_m = pl.cdiv(M, tm)
    m_pad = grid_m * tm
    if m_pad != M:
        # Zero columns (incl. the bias row) -> relu(0)=0 in the pad, cropped below.
        patches_t = jnp.pad(patches_t, ((0, 0), (0, m_pad - M)))

    # Per-step VMEM: weights (~c3*P*2B, resident) + 2x double-buffered patch
    # tile (P*tm*2B) + 2x output tile (cout*tm*2B)  ->  ~0.6 MiB at tm=1024,
    # P=128: far under the scoped default on v5e/v6e/v7x, no vmem_limit needed.
    out = pl.pallas_call(
        _make_mixedop_kernel(n_ops, cout),
        out_shape=jax.ShapeDtypeStruct((cout, m_pad), jnp.bfloat16),
        grid_spec=pltpu.PrefetchScalarGridSpec(
            num_scalar_prefetch=0,
            grid=(grid_m,),
            in_specs=[
                # constant block index -> weights stay VMEM-resident (no re-DMA)
                pl.BlockSpec((c3, P), lambda m: (0, 0)),
                pl.BlockSpec((P, tm), lambda m: (0, m)),
            ],
            out_specs=pl.BlockSpec((cout, tm), lambda m: (0, m)),
        ),
        compiler_params=pltpu.CompilerParams(
            dimension_semantics=("parallel",)),
    )(w_all_t, patches_t)

    return out[:, :M] if m_pad != M else out


def build_patches(x_nchw, Kmax, P_pad):
    """Build the shared bias-augmented im2col patches directly in the kernel's
    (P_pad, M) bf16 layout (rows ordered (kh, kw, cin); columns = n-major
    flattened pixels). Cast to bf16 happens BEFORE the K^2 blow-up."""
    N, Cin, H, W = x_nchw.shape
    M = N * H * W
    p = Kmax // 2
    x_nhwc = jnp.transpose(x_nchw, (0, 2, 3, 1)).astype(jnp.bfloat16)
    xp = jnp.pad(x_nhwc, ((0, 0), (p, p), (p, p), (0, 0)))
    cols = [xp[:, kh:kh + H, kw:kw + W, :]
            for kh in range(Kmax) for kw in range(Kmax)]       # 25 x (N,H,W,Cin)
    patches = jnp.stack(cols, axis=0)                          # (25, N, H, W, Cin)
    patches = jnp.transpose(patches, (0, 4, 1, 2, 3))          # (25, Cin, N, H, W)
    patches = patches.reshape(Kmax * Kmax * Cin, M)            # rows: (kh,kw,cin)
    P0 = Kmax * Kmax * Cin
    return jnp.concatenate(
        [patches,
         jnp.ones((1, M), jnp.bfloat16),                       # bias column (row)
         jnp.zeros((P_pad - P0 - 1, M), jnp.bfloat16)], axis=0)  # lane-align K


def embed_weight(wk, K, Kmax):
    """(Cout, Cin, K, K) -> (Kmax*Kmax*Cin, Cout) with the KxK taps placed at
    their positions inside the shared Kmax x Kmax patch, so every op reuses
    the single Kmax im2col tensor (smaller kernels get zero rows elsewhere)."""
    Cout, Cin = wk.shape[0], wk.shape[1]
    off = (Kmax - K) // 2
    wt = jnp.transpose(wk, (2, 3, 1, 0))                       # (K, K, Cin, Cout)
    wfull = jnp.zeros((Kmax, Kmax, Cin, Cout), wk.dtype)
    wfull = wfull.at[off:off + K, off:off + K].set(wt)
    return wfull.reshape(Kmax * Kmax * Cin, Cout)


if __name__ == "__main__":
    key = jax.random.PRNGKey(0)
    N, Cin, H, W = 2, 4, 16, 16
    Cout = 8
    kernel_sizes = [1, 3, 5]                   # PRIMITIVE = conv1x1/3x3/5x5
    ops_number = len(kernel_sizes)
    Kmax = max(kernel_sizes)
    M = N * H * W

    keys = jax.random.split(key, 2 + 2 * ops_number)
    x = jax.random.normal(keys[0], (N, Cin, H, W), jnp.float32)   # NCHW input
    alphas = jax.nn.softmax(
        jax.random.normal(keys[1], (ops_number,), jnp.float32))   # `weights`
    # alpha-folding into W/b requires alpha_i >= 0 (true for softmax weights).
    assert bool(jnp.all(alphas >= 0)), "alpha folding assumes non-negative weights"

    conv_ws, conv_bs = [], []
    for j, K in enumerate(kernel_sizes):
        fan_in = Cin * K * K
        wk = jax.random.normal(keys[2 + 2 * j], (Cout, Cin, K, K),
                               jnp.float32) / jnp.sqrt(float(fan_in))
        bk = 0.1 * jax.random.normal(keys[3 + 2 * j], (Cout,), jnp.float32)
        conv_ws.append(wk)
        conv_bs.append(bk)

    # ---- wrapper-side layout plumbing (shared patches + fused weights) ----
    P0 = Kmax * Kmax * Cin                      # 100 real patch entries
    P_pad = ((P0 + 1 + 127) // 128) * 128       # +1 bias row, lane-align K: 128

    patches_t = build_patches(x, Kmax, P_pad)                    # (P_pad, M) bf16

    wcols = []
    for j, (wk, bk, K) in enumerate(zip(conv_ws, conv_bs, kernel_sizes)):
        wm = embed_weight(wk, K, Kmax) * alphas[j]               # alpha folded (>=0)
        brow = (alphas[j] * bk)[None, :]                         # alpha-folded bias
        wm = jnp.concatenate([wm, brow], axis=0)                 # (P0+1, Cout)
        wm = jnp.pad(wm, ((0, P_pad - (P0 + 1)), (0, 0)))        # (P_pad, Cout)
        wcols.append(wm)
    w_all = jnp.concatenate(wcols, axis=1)                       # (P_pad, 3*Cout)
    # C3 = 24 rows (multiple of 8; block == full array) -- no pad to 32 needed.
    w_all_t = w_all.T.astype(jnp.bfloat16)                       # (C3, P_pad)

    out_cm = mixed_op_pallas(w_all_t, patches_t, ops_number, Cout, target_tm=1024)
    out = jnp.transpose(out_cm.reshape(Cout, N, H, W), (1, 0, 2, 3))   # NCHW, bf16
    out = jax.block_until_ready(out).astype(jnp.float32)

    # ---- pure-JAX reference (matches torch.nn.Conv2d + relu + weighted sum) ----
    ref = jnp.zeros((N, Cout, H, W), jnp.float32)
    for j, (wk, bk, K) in enumerate(zip(conv_ws, conv_bs, kernel_sizes)):
        y = lax.conv_general_dilated(
            x, wk, window_strides=(1, 1), padding="SAME",
            dimension_numbers=("NCHW", "OIHW", "NCHW"))
        y = y + bk[None, :, None, None]
        ref = ref + alphas[j] * jnp.maximum(y, 0.0)

    assert out.shape == (N, Cout, H, W)
    # bf16 operands + bf16 output -> loosened tolerance (f32 MXU accumulation).
    assert jnp.allclose(out, ref, atol=5e-2, rtol=5e-2), float(
        jnp.max(jnp.abs(out - ref)))
    print("KERNEL_OK")
</pallas_src>

<mosaic_0001>
module attributes {stable_mosaic.version = 11 : i64} {
  func.func @kernel(%arg0: i32, %arg1: memref<24x128xbf16, #tpu.memory_space<vmem>>, %arg2: memref<128x256xbf16, #tpu.memory_space<vmem>>, %arg3: memref<8x256xbf16, #tpu.memory_space<vmem>>) attributes {dimension_semantics = [#tpu.dimension_semantics<parallel>], iteration_bounds = array<i64: 2>, scalar_prefetch = 0 : i64, scratch_operands = 0 : i64, tpu.core_type = #tpu.core_type<tc>, window_params = [{pipeline_mode = #tpu.pipeline_mode<synchronous>, transform_indices = @transform_0, window_bounds = array<i64: 24, 128>}, {transform_indices = @transform_1, window_bounds = array<i64: 128, 256>}, {transform_indices = @transform_2, window_bounds = array<i64: 8, 256>}]} {
    %c0 = arith.constant 0 : index
    %c0_0 = arith.constant 0 : index
    %0 = vector.load %arg1[%c0, %c0_0] : memref<24x128xbf16, #tpu.memory_space<vmem>>, vector<24x128xbf16>
    %c0_1 = arith.constant 0 : index
    %c0_2 = arith.constant 0 : index
    %1 = vector.load %arg2[%c0_1, %c0_2] : memref<128x256xbf16, #tpu.memory_space<vmem>>, vector<128x256xbf16>
    %cst = arith.constant dense<0.000000e+00> : vector<24x256xf32>
    %2 = tpu.matmul %0, %1, %cst {dimension_numbers = #tpu.dot_dimension_numbers<[1], [0], [0], [1], [0, 0, 1, 1], [], []>} : vector<24x128xbf16>, vector<128x256xbf16>, vector<24x256xf32> -> vector<24x256xf32>
    %cst_3 = arith.constant 0.000000e+00 : f32
    %3 = vector.broadcast %cst_3 : f32 to vector<24x256xf32>
    %4 = arith.maximumf %2, %3 : vector<24x256xf32>
    %5 = vector.extract_strided_slice %4 {offsets = [0, 0], sizes = [8, 256], strides = [1, 1]} : vector<24x256xf32> to vector<8x256xf32>
    %6 = vector.extract_strided_slice %4 {offsets = [8, 0], sizes = [8, 256], strides = [1, 1]} : vector<24x256xf32> to vector<8x256xf32>
    %7 = arith.addf %5, %6 : vector<8x256xf32>
    %8 = vector.extract_strided_slice %4 {offsets = [16, 0], sizes = [8, 256], strides = [1, 1]} : vector<24x256xf32> to vector<8x256xf32>
    %9 = arith.addf %7, %8 : vector<8x256xf32>
    %10 = arith.truncf %9 : vector<8x256xf32> to vector<8x256xbf16>
    %c0_4 = arith.constant 0 : index
    %c0_5 = arith.constant 0 : index
    %11 = vector.load %arg3[%c0_4, %c0_5] : memref<8x256xbf16, #tpu.memory_space<vmem>>, vector<8x256xbf16>
    tpu.vector_store %arg3[%c0_4, %c0_5], %10 {strides = array<i32>} : memref<8x256xbf16, #tpu.memory_space<vmem>>, vector<8x256xbf16>,
    return
  }
  func.func @transform_0(%arg0: i32) -> (i32, i32) {
    %c0_i32 = arith.constant 0 : i32
    %c0_i32_0 = arith.constant 0 : i32
    %c0_i32_1 = arith.constant 0 : i32
    return %c0_i32, %c0_i32_0 : i32, i32
  }
  func.func @transform_1(%arg0: i32) -> (i32, i32) {
    %c0_i32 = arith.constant 0 : i32
    %c0_i32_0 = arith.constant 0 : i32
    return %c0_i32, %arg0 : i32, i32
  }
  func.func @transform_2(%arg0: i32) -> (i32, i32) {
    %c0_i32 = arith.constant 0 : i32
    %c0_i32_0 = arith.constant 0 : i32
    return %c0_i32, %arg0 : i32, i32
  }
}

</mosaic_0001>

<llo_original>
// kernel: tpu_custom_call.1
$region0: #{tpu_custom_call.1}
  #allocation0 [shape = 'u32[]', space=smem, size = 0x4, offset = 0x4, fixed_abs, tag = 'smem constant byte address 0x4 - core index']
  #allocation1 [shape = 'u32[144,128]{1,0:T(1,128)}', space=vmem, size = 0x12000, scoped, tag = 'internal scratch']
  %s0 = inlined_call_operand.hbm [shape: bf16[24,128], index: 0, kind: input, shape index: {}]
  %s1 = inlined_call_operand.hbm [shape: bf16[128,512], index: 1, kind: input, shape index: {}]
  %s2 = inlined_call_operand.hbm [shape: bf16[8,512], index: 2, kind: output, shape index: {}]
  %s3 = sld [smem:[#allocation0]]
  $region49: #{tpu_custom_call.1} parent=0
    _
  %s5 = ssub.s32 1, %s3
  %s6 = scalar_select 0, %s5, %s3
  $region1: #{tpu_custom_call.1} parent=0
    #allocation2 [shape = 'u8[6144]{0}', space=vmem, size = 0x1800, scoped, tag = 'input window, operand 0, single buffered']
    #allocation3 [shape = 's32[2]{0}', space=sflag, size = 0x8, scoped, tag = 'scoped memory for tpu_custom_call.1']
    #allocation4 [shape = 's32[2]{0}', space=sflag, size = 0x8, scoped, tag = 'scoped memory for tpu_custom_call.1']
    #allocation5 [shape = 'u8[131072]{0}', space=vmem, size = 0x20000, scoped, tag = 'input window, operand 1']
    #allocation6 [shape = 's32[2]{0}', space=sflag, size = 0x8, scoped, tag = 'scoped memory for tpu_custom_call.1']
    #allocation7 [shape = 'u8[8192]{0}', space=vmem, size = 0x2000, scoped, tag = 'output window, operand 0']
    %7 = vsyncpa [#allocation3], 0
    %8 = vsyncpa [#allocation6], 0
    %s9 = scalar_lea.sflag [#allocation6], 1
    %10 = vsyncpa %s9, 0
    %11 = vsyncpa [#allocation4], 0
    %s12 = scalar_lea.sflag [#allocation4], 1
    %13 = vsyncpa %s12, 0
    loop: start=0, step=1, limit=4
    $region2: #{tpu_custom_call.1} parent=1 // loop_pre_header
      _
    $region3: #{tpu_custom_call.1} parent=1 // loop_header
      %s15 = sphi 0, %s19
      %p16 = scmp.ge.s32.totalorder %s15, 4
      %s23 = sphi 0, %s23
      %s25 = sphi 0, %s23
      %s26 = sphi 0, %s25
      %s40 = sphi 0, %s26
      %s46 = sphi 0, %s48
      %s49 = sphi 0, %s46
      %s50 = sphi 0, %s49
      %s66 = sphi 0, %s50
      %s72 = sphi 0, %s74
      %s75 = sphi 0, %s72
      %s76 = sphi 0, %s75
      %s92 = sphi 0, %s76
    $region4: #{tpu_custom_call.1} parent=1 // loop_header_branch
      %18 = sbr.rel (%p16) target = $region8
    $region5: #{tpu_custom_call.1} parent=1 // loop_body
      %s20 = ssub.s32 %s15, 1
      %s21 = ssub.s32 %s15, 2
      %s22 = sadd.s32 %s15, 1
      %s24 = sadd.s32 %s23, 1
      %p27 = scmp.eq.s32.totalorder %s15, 1
      %p28 = scmp.ne.s32.totalorder %s23, %s25
      %p29 = scmp.eq.s32.totalorder %s15, 0
      %p30 = por %p28, %p29
      %p31 = scmp.ne.s32.totalorder %s23, %s25
      %p32 = scmp.eq.s32.totalorder %s20, 1
      %p33 = por %p31, %p32
      %p34 = scmp.ne.s32.totalorder %s25, %s26
      %p35 = scmp.eq.s32.totalorder %s20, 0
      %p36 = por %p34, %p35
      %p37 = scmp.ne.s32.totalorder %s25, %s26
      %p38 = scmp.eq.s32.totalorder %s21, 1
      %p39 = por %p37, %p38
      %p41 = scmp.ne.s32.totalorder %s26, %s40
      %p42 = scmp.eq.s32.totalorder %s21, 0
      %p43 = por %p41, %p42
      %s44 = ssub.s32 %s15, %s22
      %p45 = scmp.eq.s32.totalorder %s44, 0
      %s47 = sadd.s32 %s46, 1
      %s48 = scalar_select %p45, %s46, %s47
      %p51 = pneg %p45
      %p52 = scmp.eq.s32.totalorder %s15, 1
      %p53 = por %p51, %p52
      %p54 = scmp.ne.s32.totalorder %s46, %s49
      %p55 = scmp.eq.s32.totalorder %s15, 0
      %p56 = por %p54, %p55
      %p57 = scmp.ne.s32.totalorder %s46, %s49
      %p58 = scmp.eq.s32.totalorder %s20, 1
      %p59 = por %p57, %p58
      %p60 = scmp.ne.s32.totalorder %s49, %s50
      %p61 = scmp.eq.s32.totalorder %s20, 0
      %p62 = por %p60, %p61
      %p63 = scmp.ne.s32.totalorder %s49, %s50
      %p64 = scmp.eq.s32.totalorder %s21, 1
      %p65 = por %p63, %p64
      %p67 = scmp.ne.s32.totalorder %s50, %s66
      %p68 = scmp.eq.s32.totalorder %s21, 0
      %p69 = por %p67, %p68
      %s70 = ssub.s32 %s15, %s22
      %p71 = scmp.eq.s32.totalorder %s70, 0
      %s73 = sadd.s32 %s72, 1
      %s74 = scalar_select %p71, %s72, %s73
      %p77 = pneg %p71
      %p78 = scmp.eq.s32.totalorder %s15, 1
      %p79 = por %p77, %p78
      %p80 = scmp.ne.s32.totalorder %s72, %s75
      %p81 = scmp.eq.s32.totalorder %s15, 0
      %p82 = por %p80, %p81
      %p83 = scmp.ne.s32.totalorder %s72, %s75
      %p84 = scmp.eq.s32.totalorder %s20, 1
      %p85 = por %p83, %p84
      %p86 = scmp.ne.s32.totalorder %s75, %s76
      %p87 = scmp.eq.s32.totalorder %s20, 0
      %p88 = por %p86, %p87
      %p89 = scmp.ne.s32.totalorder %s75, %s76
      %p90 = scmp.eq.s32.totalorder %s21, 1
      %p91 = por %p89, %p90
      %p93 = scmp.ne.s32.totalorder %s76, %s92
      %p94 = scmp.eq.s32.totalorder %s21, 0
      %p95 = por %p93, %p94
      %p96 = scmp.le.s32.totalorder 1, %s15
      %p97 = scmp.lt.s32.totalorder %s15, 3
      %p98 = pnand %p96, %p97
      %p99 = pneg %p98
      // Predicated region
      $region9: #{tpu_custom_call.1} parent=5 // pred_check
        _
      $region10: #{tpu_custom_call.1} parent=5 // pred_check_branch
        %101 = sbr.rel (%p98) target = $region12
      $region11: #{tpu_custom_call.1} parent=5 // pred_region
        %s102 = ssub.s32 %s15, 1
        // Predicated region
        $region13: #{tpu_custom_call.1} parent=11 // pred_check
          %p103 = pneg %p36
        $region14: #{tpu_custom_call.1} parent=11 // pred_check_branch
          %105 = sbr.rel (%p103) target = $region16
        $region15: #{tpu_custom_call.1} parent=11 // pred_region
          %s107 = ssub.s32 192, 192
          %108 = vsyncadd [#allocation3], %s107
          %s109 = sshll.u32 [#allocation2], 4
          %s110 = int_to_ptr.vmem [resolvable:$true] %s109
          %115 = dma.hbm_to_vmem [thread:$0]  %s0, 192, %s110, [#allocation3], 64, 64, 4
        $region16: #{tpu_custom_call.1} parent=11 // pred_fallthru
          _
      $region12: #{tpu_custom_call.1} parent=5 // pred_fallthru
        _
      %p116 = scmp.lt.s32.totalorder %s15, 2
      // Predicated region
      $region17: #{tpu_custom_call.1} parent=5 // pred_check
        %p117 = pneg %p116
      $region18: #{tpu_custom_call.1} parent=5 // pred_check_branch
        %119 = sbr.rel (%p117) target = $region20
      $region19: #{tpu_custom_call.1} parent=5 // pred_region
        // Predicated region
        $region21: #{tpu_custom_call.1} parent=19 // pred_check
          %p120 = pneg %p56
        $region22: #{tpu_custom_call.1} parent=19 // pred_check_branch
          %122 = sbr.rel (%p120) target = $region24
        $region23: #{tpu_custom_call.1} parent=19 // pred_region
          %s123 = sand.u32 %s46, 1
          %s124 = scalar_lea.sflag [#allocation6], %s123
          %s125 = sand.u32 %s46, 1
          %s126 = smul.addr %s125, 128
          %s127 = scalar_lea.vmem [#allocation5], %s126
          %s128 = smul.u32 2, %s15
          %s130 = ssub.s32 2048, 2048
          %131 = vsyncadd %s124, %s130
          %s132 = smul.addr %s128, 64
          %s133 = scalar_lea.hbm %s1, %s132
          %s134 = sshll.u32 %s127, 4
          %s135 = int_to_ptr.vmem [resolvable:$true] %s134
          %140 = dma.hbm_to_vmem [thread:$0]  %s133, 2048, %s135, %s124, 256, 128, 8
        $region24: #{tpu_custom_call.1} parent=19 // pred_fallthru
          _
      $region20: #{tpu_custom_call.1} parent=5 // pred_fallthru
        _
      %p141 = scmp.le.s32.totalorder 1, %s15
      %p142 = scmp.lt.s32.totalorder %s15, 3
      %p143 = pnand %p141, %p142
      %p144 = pneg %p143
      // Predicated region
      $region25: #{tpu_custom_call.1} parent=5 // pred_check
        _
      $region26: #{tpu_custom_call.1} parent=5 // pred_check_branch
        %146 = sbr.rel (%p143) target = $region28
      $region27: #{tpu_custom_call.1} parent=5 // pred_region
        %s147 = ssub.s32 %s15, 1
        // Predicated region
        $region29: #{tpu_custom_call.1} parent=27 // pred_check
          %p148 = pneg %p36
        $region30: #{tpu_custom_call.1} parent=27 // pred_check_branch
          %150 = sbr.rel (%p148) target = $region32
        $region31: #{tpu_custom_call.1} parent=27 // pred_region
          %151 = dma.done [#allocation3], 192
        $region32: #{tpu_custom_call.1} parent=27 // pred_fallthru
          _
        %s152 = sand.u32 %s49, 1
        %s153 = scalar_lea.sflag [#allocation6], %s152
        %s154 = sand.u32 %s49, 1
        %s155 = smul.addr %s154, 128
        %s156 = scalar_lea.vmem [#allocation5], %s155
        // Predicated region
        $region33: #{tpu_custom_call.1} parent=27 // pred_check
          %p157 = pneg %p62
        $region34: #{tpu_custom_call.1} parent=27 // pred_check_branch
          %159 = sbr.rel (%p157) target = $region36
        $region35: #{tpu_custom_call.1} parent=27 // pred_region
          %160 = dma.done %s153, 2048
        $region36: #{tpu_custom_call.1} parent=27 // pred_fallthru
          _
        %p161 = pneg %p36
        %p162 = pneg %p33
        %s163 = sand.u32 %s49, 1
        %s164 = scalar_lea.sflag [#allocation6], %s163
        %s165 = sand.u32 %s49, 1
        %s166 = smul.addr %s165, 128
        %s167 = scalar_lea.vmem [#allocation5], %s166
        %p168 = pneg %p62
        %p169 = pneg %p59
        %p170 = pneg %p88
        %p171 = pneg %p85
        %s172 = sand.u32 %s75, 1
        %s173 = scalar_lea.sflag [#allocation4], %s172
        %s174 = sand.u32 %s75, 1
        %s175 = smul.addr %s174, 8
        %s176 = scalar_lea.vmem [#allocation7], %s175
        %s177 = smul.u32 2, %s20
        %s178 = smul.u32 2, %s20
        %v180 = vld [vmem:[#allocation2] sm:$0xf]
        %v181 = vld [vmem:[#allocation2 + $0x4] sm:$0xf]
        %v182 = vld [vmem:[#allocation2 + $0x8] sm:$0xf]
        %v183 = vld [vmem:[%s156] sm:$0xff]
        %v184 = vld [vmem:[%s156 + $0x8] sm:$0xff]
        %v185 = vld [vmem:[%s156 + $0x10] sm:$0xff]
        %v186 = vld [vmem:[%s156 + $0x18] sm:$0xff]
        %v187 = vld [vmem:[%s156 + $0x20] sm:$0xff]
        %v188 = vld [vmem:[%s156 + $0x28] sm:$0xff]
        %v189 = vld [vmem:[%s156 + $0x30] sm:$0xff]
        %v190 = vld [vmem:[%s156 + $0x38] sm:$0xff]
        %v191 = vld [vmem:[%s156 + $0x40] sm:$0xff]
        %v192 = vld [vmem:[%s156 + $0x48] sm:$0xff]
        %v193 = vld [vmem:[%s156 + $0x50] sm:$0xff]
        %v194 = vld [vmem:[%s156 + $0x58] sm:$0xff]
        %v195 = vld [vmem:[%s156 + $0x60] sm:$0xff]
        %v196 = vld [vmem:[%s156 + $0x68] sm:$0xff]
        %v197 = vld [vmem:[%s156 + $0x70] sm:$0xff]
        %v198 = vld [vmem:[%s156 + $0x78] sm:$0xff]
        %v202 = vunpack.c.l.b16 %v180
        %v203 = vunpack.c.l.b16 %v181
        %v204 = vunpack.c.l.b16 %v182
        %v205 = vpack.c.b16 %v203, %v202
        %v206 = vpack.c.b16 %v204, %v204
        %v225 = vunpack.c.l.b16 %v183
        %v226 = vunpack.c.h.b16 %v183
        %v227 = vunpack.c.l.b16 %v184
        %v228 = vunpack.c.h.b16 %v184
        %v229 = vunpack.c.l.b16 %v185
        %v230 = vunpack.c.h.b16 %v185
        %v231 = vunpack.c.l.b16 %v186
        %v232 = vunpack.c.h.b16 %v186
        %v233 = vunpack.c.l.b16 %v187
        %v234 = vunpack.c.h.b16 %v187
        %v235 = vunpack.c.l.b16 %v188
        %v236 = vunpack.c.h.b16 %v188
        %v237 = vunpack.c.l.b16 %v189
        %v238 = vunpack.c.h.b16 %v189
        %v239 = vunpack.c.l.b16 %v190
        %v240 = vunpack.c.h.b16 %v190
        %v241 = vunpack.c.l.b16 %v191
        %v242 = vunpack.c.h.b16 %v191
        %v243 = vunpack.c.l.b16 %v192
        %v244 = vunpack.c.h.b16 %v192
        %v245 = vunpack.c.l.b16 %v193
        %v246 = vunpack.c.h.b16 %v193
        %v247 = vunpack.c.l.b16 %v194
        %v248 = vunpack.c.h.b16 %v194
        %v249 = vunpack.c.l.b16 %v195
        %v250 = vunpack.c.h.b16 %v195
        %v251 = vunpack.c.l.b16 %v196
        %v252 = vunpack.c.h.b16 %v196
        %v253 = vunpack.c.l.b16 %v197
        %v254 = vunpack.c.h.b16 %v197
        %v255 = vunpack.c.l.b16 %v198
        %v256 = vunpack.c.h.b16 %v198
        %v257 = vpack.c.b16 %v227, %v225
        %v258 = vpack.c.b16 %v228, %v226
        %v259 = vpack.c.b16 %v231, %v229
        %v260 = vpack.c.b16 %v232, %v230
        %v261 = vpack.c.b16 %v235, %v233
        %v262 = vpack.c.b16 %v236, %v234
        %v263 = vpack.c.b16 %v239, %v237
        %v264 = vpack.c.b16 %v240, %v238
        %v265 = vpack.c.b16 %v243, %v241
        %v266 = vpack.c.b16 %v244, %v242
        %v267 = vpack.c.b16 %v247, %v245
        %v268 = vpack.c.b16 %v248, %v246
        %v269 = vpack.c.b16 %v251, %v249
        %v270 = vpack.c.b16 %v252, %v250
        %v271 = vpack.c.b16 %v255, %v253
        %v272 = vpack.c.b16 %v256, %v254
        %289 = vmatprep.subr.bf16.mxu0 %v258
        %290 = vmatpush1.bf16.msra.mxu0 %v257
        %291 = vmatprep.subr.bf16.mxu0 %v260
        %292 = vmatpush1.bf16.msra.mxu0 %v259
        %293 = vmatprep.subr.bf16.mxu0 %v262
        %294 = vmatpush1.bf16.msra.mxu0 %v261
        %295 = vmatprep.subr.bf16.mxu0 %v264
        %296 = vmatpush1.bf16.msra.mxu0 %v263
        %297 = vmatprep.subr.bf16.mxu0 %v266
        %298 = vmatpush1.bf16.msra.mxu0 %v265
        %299 = vmatprep.subr.bf16.mxu0 %v268
        %300 = vmatpush1.bf16.msra.mxu0 %v267
        %301 = vmatprep.subr.bf16.mxu0 %v270
        %302 = vmatpush1.bf16.msra.mxu0 %v269
        %303 = vmatprep.subr.bf16.mxu0 %v272
        %304 = vmatpush1.bf16.msra.mxu0 %v271
        %305 = vmatprep.subr.bf16.mxu0 0
        %306 = vmatpush1.bf16.msra.mxu0 0
        %307 = vmatprep.subr.bf16.mxu0 0
        %308 = vmatpush1.bf16.msra.mxu0 0
        %309 = vmatprep.subr.bf16.mxu0 0
        %310 = vmatpush1.bf16.msra.mxu0 0
        %311 = vmatprep.subr.bf16.mxu0 0
        %312 = vmatpush1.bf16.msra.mxu0 0
        %313 = vmatprep.subr.bf16.mxu0 0
        %314 = vmatpush1.bf16.msra.mxu0 0
        %315 = vmatprep.subr.bf16.mxu0 0
        %316 = vmatpush1.bf16.msra.mxu0 0
        %317 = vmatprep.subr.bf16.mxu0 0
        %318 = vmatpush1.bf16.msra.mxu0 0
        %319 = vmatprep.subr.bf16.mxu0 0
        %320 = vmatpush1.bf16.msra.mxu0 0
        %321 = vmatprep.mubr.bf16.mxu0 0
        %322 = vmatmul.mubr.bf16.gmra.mrb[0].mxu0 %v205
        %v323 = vpop.f32.mrb[0].mxu0
        %v324 = vadd.f32 0.0, %v323
        %v325 = vpop.f32.mrb[0].mxu0
        %v326 = vadd.f32 0.0, %v325
        %v327 = vpop.f32.mrb[0].mxu0
        %v328 = vadd.f32 0.0, %v327
        %v329 = vpop.f32.mrb[0].mxu0
        %v330 = vadd.f32 0.0, %v329
        %331 = vmatprep.mubr.bf16.mxu0 0
        %332 = vmatmul.mubr.bf16.gmra.mrb[0].mxu0 %v206
        %v333 = vpop.f32.mrb[0].mxu0
        %v334 = vadd.f32 0.0, %v333
        %v335 = vpop.f32.mrb[0].mxu0
        %v336 = vadd.f32 0.0, %v335
        %v337 = vpop.f32.mrb[0].mxu0
        %v338 = vpop.f32.mrb[0].mxu0
        %339 = vdwg.mxu0
        %v340 = vmax.f32 %v324, 0.0
        %v341 = vmax.f32 %v326, 0.0
        %v342 = vmax.f32 %v328, 0.0
        %v343 = vmax.f32 %v330, 0.0
        %v344 = vmax.f32 %v334, 0.0
        %v345 = vmax.f32 %v336, 0.0
        %v346 = vadd.f32 %v340, %v342
        %v347 = vadd.f32 %v341, %v343
        %v348 = vadd.f32 %v346, %v344
        %v349 = vadd.f32 %v347, %v345
        %v350 = vpack.c.bf16 %v348, %v348
        %v351 = vpack.c.bf16 %v349, %v349
        %v354 = vunpack.c.l.b16 %v350
        %v355 = vunpack.c.l.b16 %v351
        %v356 = vpack.c.b16 %v355, %v354
        %358 = vst [vmem:[%s176] sm:$0xff] %v356
        %s359 = sand.u32 %s75, 1
        %s360 = scalar_lea.sflag [#allocation4], %s359
        %s361 = sand.u32 %s75, 1
        %s362 = smul.addr %s361, 8
        %s363 = scalar_lea.vmem [#allocation7], %s362
        // Predicated region
        $region37: #{tpu_custom_call.1} parent=27 // pred_check
          %p364 = pneg %p85
        $region38: #{tpu_custom_call.1} parent=27 // pred_check_branch
          %366 = sbr.rel (%p364) target = $region40
        $region39: #{tpu_custom_call.1} parent=27 // pred_region
          %s367 = smul.u32 2, %s20
          %s369 = ssub.s32 128, 128
          %370 = vsyncadd %s360, %s369
          %s371 = smul.addr %s367, 64
          %s372 = scalar_lea.hbm %s2, %s371
          %s374 = sshll.u32 %s363, 4
          %s375 = int_to_ptr.vmem [resolvable:$true] %s374
          %377 = dma.vmem_to_hbm [thread:$0]  %s375, 128, %s372, %s360
        $region40: #{tpu_custom_call.1} parent=27 // pred_fallthru
          _
      $region28: #{tpu_custom_call.1} parent=5 // pred_fallthru
        _
      %p378 = scmp.le.s32.totalorder 2, %s15
      // Predicated region
      $region41: #{tpu_custom_call.1} parent=5 // pred_check
        %p379 = pneg %p378
      $region42: #{tpu_custom_call.1} parent=5 // pred_check_branch
        %381 = sbr.rel (%p379) target = $region44
      $region43: #{tpu_custom_call.1} parent=5 // pred_region
        %s382 = ssub.s32 %s15, 2
        // Predicated region
        $region45: #{tpu_custom_call.1} parent=43 // pred_check
          %p383 = pneg %p91
        $region46: #{tpu_custom_call.1} parent=43 // pred_check_branch
          %385 = sbr.rel (%p383) target = $region48
        $region47: #{tpu_custom_call.1} parent=43 // pred_region
          %s386 = sand.u32 %s76, 1
          %s387 = scalar_lea.sflag [#allocation4], %s386
          %s388 = sand.u32 %s76, 1
          %s389 = smul.addr %s388, 8
          %s390 = scalar_lea.vmem [#allocation7], %s389
          %391 = dma.done %s387, 128
        $region48: #{tpu_custom_call.1} parent=43 // pred_fallthru
          _
      $region44: #{tpu_custom_call.1} parent=5 // pred_fallthru
        _
    $region6: #{tpu_custom_call.1} parent=1 // loop_footer
      %s19 = sadd.s32 1, %s15
    $region7: #{tpu_custom_call.1} parent=1 // loop_footer_branch
      %14 = sbr.rel target = $region3
    $region8: #{tpu_custom_call.1} parent=1 // loop_exit
      _
    %392 = vsyncpa [#allocation3], 1
    %s393 = scalar_lea.sflag [#allocation3], 1
    %394 = vsyncpa %s393, 1
    %395 = vsyncpa [#allocation6], 1
    %s396 = scalar_lea.sflag [#allocation6], 1
    %397 = vsyncpa %s396, 1
    %398 = vsyncpa [#allocation4], 1
    %s399 = scalar_lea.sflag [#allocation4], 1
    %400 = vsyncpa %s399, 1

</llo_original>
